<compile_context>
chip_gen: v6e
topology: v6e:2x2x1
jax: 0.10.0
libtpu: 0.0.40
codegen_flags: <defaults>
</compile_context>

<pallas_src>
import numpy as np
import jax
import jax.numpy as jnp
from jax.experimental import pallas as pl
from jax.experimental.pallas import tpu as pltpu


def _device_kind():
    try:
        return jax.devices()[0].device_kind.lower()
    except Exception:
        return ""


def _lane_tile_max():
    # v5*: ~0.82 TB/s HBM -> a 16K-lane tile already gives ~1 us of DMA per
    # step (~75% roofline); v6e/v7x need bigger tiles to hide the fixed
    # per-step overhead.  VMEM use stays ~3.3 MiB double-buffered at 32K.
    return 16384 if "v5" in _device_kind() else 32768


def _two_tensorcores():
    # v7x has 2 TensorCores per chip; an odd "parallel" tile count would
    # leave one core partially idle.
    return "v7" in _device_kind()


def _choose_tiling(n_pairs):
    """Pick (lane_tile, n_tiles); lane_tile is a multiple of 128."""
    tile_max = _lane_tile_max()
    padded = max(128, ((n_pairs + 127) // 128) * 128)
    if padded <= tile_max:
        return padded, 1
    tp = tile_max
    n_tiles = pl.cdiv(n_pairs, tp)
    if _two_tensorcores() and n_tiles % 2:
        n_tiles += 1  # shard evenly across both TensorCores
    return tp, n_tiles


def _pair_kernel(cf_ref, cs_ref, po_ref, out_ref):
    """cf/cs/po : [3, tp] f32 planar component slabs.
    out        : [4, tp] f32 (rows 0-2 paircoord, row 3 distance)."""
    pc = cf_ref[...] - cs_ref[...] + po_ref[...]
    d2 = jnp.sum(pc * pc, axis=0, keepdims=True)          # cross-sublane reduce (XLU)
    out_ref[...] = jnp.concatenate([pc, jnp.sqrt(d2)], axis=0)  # single store


def _pair_geometry_pallas(cf_slab, cs_slab, po_slab, tp, n_tiles):
    """Slabs: [3, Pp] float32 with Pp = tp * n_tiles.
    Returns [4, Pp] float32 (paircoord rows 0-2, distance row 3)."""
    Pp = tp * n_tiles
    return pl.pallas_call(
        _pair_kernel,
        out_shape=jax.ShapeDtypeStruct((4, Pp), jnp.float32),
        grid_spec=pltpu.PrefetchScalarGridSpec(
            num_scalar_prefetch=0,
            grid=(n_tiles,),
            in_specs=[pl.BlockSpec((3, tp), lambda i: (0, i)),
                      pl.BlockSpec((3, tp), lambda i: (0, i)),
                      pl.BlockSpec((3, tp), lambda i: (0, i))],
            out_specs=pl.BlockSpec((4, tp), lambda i: (0, i))),
        compiler_params=pltpu.CompilerParams(
            dimension_semantics=("parallel",)),
    )(cf_slab, cs_slab, po_slab)


class DispatchNeighborsJAX:
    """JAX/Pallas port of hippynn _DispatchNeighbors."""

    def __init__(self, dist_hard_max):
        self.dist_hard_max = dist_hard_max
        self.set_combinator(1)
        self.n_images = 1

    def set_combinator(self, n_images):
        self.n_images = int(n_images)

    def compute_one(self, r, c):
        # TODO(synk): compute_one is abstract (returns NotImplemented) in the
        # PyTorch base class; this brute-force periodic neighbor search is
        # host-side glue so forward() is exercisable.  For realistic atom
        # counts this host path (not the Pallas kernel) dominates end-to-end
        # and should move on-device (cell list).
        pf_list, ps_list, of_list = [], [], []
        for oi in (-1, 0, 1):
            for oj in (-1, 0, 1):
                for ok in (-1, 0, 1):
                    shift = oi * c[0] + oj * c[1] + ok * c[2]
                    diff = r[:, None, :] - r[None, :, :] + shift
                    d = np.linalg.norm(diff, axis=-1)
                    mask = d < self.dist_hard_max
                    if (oi, oj, ok) == (0, 0, 0):
                        np.fill_diagonal(mask, False)
                    a, b = np.nonzero(mask)
                    if len(a):
                        pf_list.append(a)
                        ps_list.append(b)
                        of_list.append(
                            np.tile(np.array([oi, oj, ok], dtype=np.int64), (len(a), 1)))
        if not pf_list:
            return (np.zeros(0, np.int64), np.zeros(0, np.int64),
                    np.zeros((0, 3), np.int64))
        return (np.concatenate(pf_list), np.concatenate(ps_list),
                np.concatenate(of_list))

    def forward(self, coordinates, nonblank, real_atoms, inv_real_atoms, cell,
                mol_index, n_molecules, n_atoms_max):
        coords_np = np.asarray(coordinates)
        nonblank_np = np.asarray(nonblank)
        cell_np = np.asarray(cell)

        nlist_data = []
        for mol_num in range(n_molecules):
            r = coords_np[mol_num][nonblank_np[mol_num]]
            c = cell_np[mol_num]
            pf, ps, of = self.compute_one(r, c)
            if len(pf) == 0:
                continue
            pf = pf + mol_num * n_atoms_max
            ps = ps + mol_num * n_atoms_max
            max_images = int(np.abs(of).max())
            if max_images > self.n_images:
                self.set_combinator(max_images)
            nlist_data.append((pf, ps, of))

        if nlist_data:
            pf_all = np.concatenate([d[0] for d in nlist_data])
            ps_all = np.concatenate([d[1] for d in nlist_data])
            offsets_np = np.concatenate([d[2] for d in nlist_data])
            pair_first = inv_real_atoms[jnp.asarray(pf_all, jnp.int32)]
            pair_second = inv_real_atoms[jnp.asarray(ps_all, jnp.int32)]
            # NOTE: offsets kept as int32 (exact; realistic |offset| << 2^24).
            offsets = jnp.asarray(offsets_np, jnp.int32)
        else:
            pair_first = jnp.zeros((0,), jnp.int32)
            pair_second = jnp.zeros((0,), jnp.int32)
            offsets = jnp.zeros((0, 3), jnp.int32)

        P = pair_first.shape[0]
        if P == 0:
            return (jnp.zeros((0,), jnp.float32), pair_first, pair_second,
                    jnp.zeros((0, 3), jnp.float32), offsets,
                    jnp.zeros((0,), jnp.int32))

        # --- hoisted out of the kernel (XLA side) ---------------------------
        n_off = 2 * self.n_images + 1
        o = offsets + self.n_images
        offset_index = (o[:, 2] + n_off * (o[:, 1] + n_off * o[:, 0])).astype(jnp.int32)
        pair_mol = mol_index[pair_first]                               # [P]

        # Planar (component-major) tables, built once; both are tiny.
        coordflat = jnp.reshape(
            coordinates, (n_molecules * n_atoms_max, 3))[real_atoms]
        coordflat_t = coordflat.T.astype(jnp.float32)                  # [3, N_real]

        # offset_table[m, idx, :] = offsets_enum[idx] @ cell[m]
        idx = jnp.arange(n_off ** 3, dtype=jnp.int32)
        enum = jnp.stack([idx // (n_off * n_off),
                          (idx // n_off) % n_off,
                          idx % n_off], axis=-1) - self.n_images
        offset_table = jnp.einsum('ok,mkj->moj', enum.astype(cell.dtype), cell)
        offset_table_t = offset_table.reshape(
            n_molecules * n_off ** 3, 3).T.astype(jnp.float32)         # [3, M*n_off^3]
        pair_tab_idx = pair_mol * (n_off ** 3) + offset_index          # [P]

        # Pad the cheap int32 indices (not the 36 B/pair data) up to the tile
        # grid; pad value 0 is a valid clamped index so tail lanes stay finite.
        tp, n_tiles = _choose_tiling(P)
        pad = tp * n_tiles - P
        pf_pad = jnp.pad(pair_first, (0, pad))
        ps_pad = jnp.pad(pair_second, (0, pad))
        pt_pad = jnp.pad(pair_tab_idx, (0, pad))

        # Lane-axis gathers emit the planar [3, Pp] slabs directly.
        cf_slab = coordflat_t[:, pf_pad]
        cs_slab = coordflat_t[:, ps_pad]
        po_slab = offset_table_t[:, pt_pad]

        out = _pair_geometry_pallas(cf_slab, cs_slab, po_slab, tp, n_tiles)

        # [P, 3] layout kept for parity with the PyTorch interface; padded
        # tail lanes are sliced off here.
        paircoord = out[0:3, :P].T
        distflat2 = out[3, :P]
        return (distflat2, pair_first, pair_second, paircoord, offsets, offset_index)


if __name__ == "__main__":
    key = jax.random.PRNGKey(0)

    n_molecules = 2
    n_atoms_max = 8
    n_real_per_mol = [7, 6]
    box = 6.0
    dist_hard_max = 3.0

    nonblank_np = np.zeros((n_molecules, n_atoms_max), dtype=bool)
    for m, nr in enumerate(n_real_per_mol):
        nonblank_np[m, :nr] = True

    coordinates = jax.random.uniform(
        key, (n_molecules, n_atoms_max, 3), jnp.float32, 0.0, box)
    coordinates = coordinates * jnp.asarray(nonblank_np, jnp.float32)[..., None]

    cell = jnp.stack([jnp.eye(3, dtype=jnp.float32) * box
                      for _ in range(n_molecules)], axis=0)

    flat_nonblank = nonblank_np.reshape(-1)
    real_atoms_np = np.nonzero(flat_nonblank)[0].astype(np.int32)
    inv_real_atoms_np = np.zeros(n_molecules * n_atoms_max, dtype=np.int32)
    inv_real_atoms_np[real_atoms_np] = np.arange(len(real_atoms_np), dtype=np.int32)
    mol_index_np = (real_atoms_np // n_atoms_max).astype(np.int32)

    real_atoms = jnp.asarray(real_atoms_np)
    inv_real_atoms = jnp.asarray(inv_real_atoms_np)
    mol_index = jnp.asarray(mol_index_np)
    nonblank = jnp.asarray(nonblank_np)

    module = DispatchNeighborsJAX(dist_hard_max)
    outs = module.forward(coordinates, nonblank, real_atoms, inv_real_atoms,
                          cell, mol_index, n_molecules, n_atoms_max)
    outs = jax.block_until_ready(outs)
    distflat2, pair_first, pair_second, paircoord, offsets, offset_index = outs

    # lightweight numpy reference check of the kernel + wrapper math
    cf = np.asarray(coordinates).reshape(-1, 3)[np.asarray(real_atoms)]
    pf_np = np.asarray(pair_first)
    ps_np = np.asarray(pair_second)
    pmol = np.asarray(mol_index)[pf_np]
    pc_ref = (cf[pf_np] - cf[ps_np]
              + np.einsum('pk,pkj->pj',
                          np.asarray(offsets, np.float32),
                          np.asarray(cell)[pmol]))
    n_off = module.n_images * 2 + 1
    o_np = np.asarray(offsets) + module.n_images
    oidx_ref = o_np[:, 2] + n_off * (o_np[:, 1] + n_off * o_np[:, 0])
    assert pair_first.shape[0] > 0
    assert np.allclose(np.asarray(paircoord), pc_ref, atol=1e-5)
    assert np.allclose(np.asarray(distflat2),
                       np.linalg.norm(pc_ref, axis=1), atol=1e-5)
    assert np.array_equal(np.asarray(offset_index), oidx_ref)

    print("KERNEL_OK")
</pallas_src>

<mosaic_0001>
module attributes {stable_mosaic.version = 11 : i64} {
  func.func @_pair_kernel(%arg0: i32, %arg1: memref<3x128xf32, #tpu.memory_space<vmem>>, %arg2: memref<3x128xf32, #tpu.memory_space<vmem>>, %arg3: memref<3x128xf32, #tpu.memory_space<vmem>>, %arg4: memref<4x128xf32, #tpu.memory_space<vmem>>) attributes {dimension_semantics = [#tpu.dimension_semantics<parallel>], iteration_bounds = array<i64: 1>, scalar_prefetch = 0 : i64, scratch_operands = 0 : i64, tpu.core_type = #tpu.core_type<tc>, window_params = [{transform_indices = @transform_0, window_bounds = array<i64: 3, 128>}, {transform_indices = @transform_1, window_bounds = array<i64: 3, 128>}, {transform_indices = @transform_2, window_bounds = array<i64: 3, 128>}, {transform_indices = @transform_3, window_bounds = array<i64: 4, 128>}]} {
    %c0 = arith.constant 0 : index
    %c0_0 = arith.constant 0 : index
    %0 = vector.load %arg1[%c0, %c0_0] : memref<3x128xf32, #tpu.memory_space<vmem>>, vector<3x128xf32>
    %c0_1 = arith.constant 0 : index
    %c0_2 = arith.constant 0 : index
    %1 = vector.load %arg2[%c0_1, %c0_2] : memref<3x128xf32, #tpu.memory_space<vmem>>, vector<3x128xf32>
    %2 = arith.subf %0, %1 : vector<3x128xf32>
    %c0_3 = arith.constant 0 : index
    %c0_4 = arith.constant 0 : index
    %3 = vector.load %arg3[%c0_3, %c0_4] : memref<3x128xf32, #tpu.memory_space<vmem>>, vector<3x128xf32>
    %4 = arith.addf %2, %3 : vector<3x128xf32>
    %5 = arith.mulf %4, %4 : vector<3x128xf32>
    %cst = arith.constant dense<0.000000e+00> : vector<128xf32>
    %6 = vector.multi_reduction <add>, %5, %cst [0] : vector<3x128xf32> to vector<128xf32>
    %7 = vector.shape_cast %6 : vector<128xf32> to vector<1x128xf32>
    %8 = math.sqrt %7 : vector<1x128xf32>
    %9 = tpu.concatenate %4, %8 in 0 : vector<3x128xf32>, vector<1x128xf32> -> vector<4x128xf32>
    %c0_5 = arith.constant 0 : index
    %c0_6 = arith.constant 0 : index
    %10 = vector.load %arg4[%c0_5, %c0_6] : memref<4x128xf32, #tpu.memory_space<vmem>>, vector<4x128xf32>
    tpu.vector_store %arg4[%c0_5, %c0_6], %9 {strides = array<i32>} : memref<4x128xf32, #tpu.memory_space<vmem>>, vector<4x128xf32>,
    return
  }
  func.func @transform_0(%arg0: i32) -> (i32, i32) {
    %c0_i32 = arith.constant 0 : i32
    %c0_i32_0 = arith.constant 0 : i32
    return %c0_i32, %arg0 : i32, i32
  }
  func.func @transform_1(%arg0: i32) -> (i32, i32) {
    %c0_i32 = arith.constant 0 : i32
    %c0_i32_0 = arith.constant 0 : i32
    return %c0_i32, %arg0 : i32, i32
  }
  func.func @transform_2(%arg0: i32) -> (i32, i32) {
    %c0_i32 = arith.constant 0 : i32
    %c0_i32_0 = arith.constant 0 : i32
    return %c0_i32, %arg0 : i32, i32
  }
  func.func @transform_3(%arg0: i32) -> (i32, i32) {
    %c0_i32 = arith.constant 0 : i32
    %c0_i32_0 = arith.constant 0 : i32
    return %c0_i32, %arg0 : i32, i32
  }
}

</mosaic_0001>

<llo_original>
// kernel: tpu_custom_call.1
$region0: #{tpu_custom_call.1}
  #allocation0 [shape = 'u32[]', space=smem, size = 0x4, offset = 0x4, fixed_abs, tag = 'smem constant byte address 0x4 - core index']
  #allocation1 [shape = 'u32[144,128]{1,0:T(1,128)}', space=vmem, size = 0x12000, scoped, tag = 'internal scratch']
  %s0 = inlined_call_operand.hbm [shape: f32[3,128], index: 0, kind: input, shape index: {}]
  %s1 = inlined_call_operand.hbm [shape: f32[3,128], index: 1, kind: input, shape index: {}]
  %s2 = inlined_call_operand.hbm [shape: f32[3,128], index: 2, kind: input, shape index: {}]
  %s3 = inlined_call_operand.hbm [shape: f32[4,128], index: 3, kind: output, shape index: {}]
  %s4 = sld [smem:[#allocation0]]
  $region34: #{tpu_custom_call.1} parent=0
    _
  %s6 = ssub.s32 1, %s4
  %s7 = scalar_select 0, %s6, %s4
  $region1: #{tpu_custom_call.1} parent=0
    #allocation2 [shape = 'u8[2048]{0}', space=vmem, size = 0x800, scoped, tag = 'input window, operand 0, single buffered']
    #allocation3 [shape = 's32[1]{0}', space=sflag, size = 0x4, scoped, tag = 'scoped memory for tpu_custom_call.1']
    #allocation4 [shape = 's32[1]{0}', space=sflag, size = 0x4, scoped, tag = 'scoped memory for tpu_custom_call.1']
    #allocation5 [shape = 'u8[2048]{0}', space=vmem, size = 0x800, scoped, tag = 'input window, operand 1, single buffered']
    #allocation6 [shape = 's32[1]{0}', space=sflag, size = 0x4, scoped, tag = 'scoped memory for tpu_custom_call.1']
    #allocation7 [shape = 'u8[2048]{0}', space=vmem, size = 0x800, scoped, tag = 'input window, operand 2, single buffered']
    #allocation8 [shape = 'u8[2048]{0}', space=vmem, size = 0x800, scoped, tag = 'output window, operand 0, single buffered']
    %8 = vsyncpa [#allocation3], 0
    %9 = vsyncpa [#allocation6], 0
    %10 = vsyncpa [#allocation4], 0
    // Predicated region
    $region2: #{tpu_custom_call.1} parent=1 // pred_check
      _
    $region3: #{tpu_custom_call.1} parent=1 // pred_check_branch
      %12 = sbr.rel (0) target = $region5
    $region4: #{tpu_custom_call.1} parent=1 // pred_region
      %s14 = ssub.s32 64, 64
      %15 = vsyncadd [#allocation3], %s14
      %s17 = sshll.u32 [#allocation2], 4
      %s18 = int_to_ptr.vmem [resolvable:$true] %s17
      %20 = dma.hbm_to_vmem [thread:$0]  %s0, 64, %s18, [#allocation3]
    $region5: #{tpu_custom_call.1} parent=1 // pred_fallthru
      _
    // Predicated region
    $region6: #{tpu_custom_call.1} parent=1 // pred_check
      _
    $region7: #{tpu_custom_call.1} parent=1 // pred_check_branch
      %22 = sbr.rel (0) target = $region9
    $region8: #{tpu_custom_call.1} parent=1 // pred_region
      %s24 = ssub.s32 64, 64
      %25 = vsyncadd [#allocation6], %s24
      %s27 = sshll.u32 [#allocation5], 4
      %s28 = int_to_ptr.vmem [resolvable:$true] %s27
      %30 = dma.hbm_to_vmem [thread:$0]  %s1, 64, %s28, [#allocation6]
    $region9: #{tpu_custom_call.1} parent=1 // pred_fallthru
      _
    // Predicated region
    $region10: #{tpu_custom_call.1} parent=1 // pred_check
      _
    $region11: #{tpu_custom_call.1} parent=1 // pred_check_branch
      %32 = sbr.rel (0) target = $region13
    $region12: #{tpu_custom_call.1} parent=1 // pred_region
      %s34 = ssub.s32 64, 64
      %35 = vsyncadd [#allocation6], %s34
      %s37 = sshll.u32 [#allocation7], 4
      %s38 = int_to_ptr.vmem [resolvable:$true] %s37
      %40 = dma.hbm_to_vmem [thread:$0]  %s2, 64, %s38, [#allocation6]
    $region13: #{tpu_custom_call.1} parent=1 // pred_fallthru
      _
    // Predicated region
    $region14: #{tpu_custom_call.1} parent=1 // pred_check
      _
    $region15: #{tpu_custom_call.1} parent=1 // pred_check_branch
      %42 = sbr.rel (0) target = $region17
    $region16: #{tpu_custom_call.1} parent=1 // pred_region
      %43 = dma.done [#allocation3], 64
    $region17: #{tpu_custom_call.1} parent=1 // pred_fallthru
      _
    // Predicated region
    $region18: #{tpu_custom_call.1} parent=1 // pred_check
      _
    $region19: #{tpu_custom_call.1} parent=1 // pred_check_branch
      %45 = sbr.rel (0) target = $region21
    $region20: #{tpu_custom_call.1} parent=1 // pred_region
      %46 = dma.done [#allocation6], 64
    $region21: #{tpu_custom_call.1} parent=1 // pred_fallthru
      _
    // Predicated region
    $region22: #{tpu_custom_call.1} parent=1 // pred_check
      _
    $region23: #{tpu_custom_call.1} parent=1 // pred_check_branch
      %48 = sbr.rel (0) target = $region25
    $region24: #{tpu_custom_call.1} parent=1 // pred_region
      %49 = dma.done [#allocation6], 64
    $region25: #{tpu_custom_call.1} parent=1 // pred_fallthru
      _
    %v50 = vld [vmem:[#allocation2] sm:$0x7]
    %v51 = vld [vmem:[#allocation5] sm:$0x7]
    %v52 = vsub.f32 %v50, %v51
    %v53 = vld [vmem:[#allocation7] sm:$0x7]
    %v54 = vadd.f32 %v52, %v53
    %v55 = vmul.f32 %v54, %v54
    %vm56 = vcmask 1042432
    %v57 = vsel %vm56, %v55, 0.0
    %v58 = vrot.slane %v57, 4
    %v59 = vadd.f32 %v57, %v58
    %v60 = vrot.slane %v59, 2
    %v61 = vadd.f32 %v59, %v60
    %v62 = vrot.slane %v61, 1
    %v63 = vadd.f32 %v61, %v62
    %v64 = vrsqrt.pop %v63
    %v65 = vmul.f32 %v63, %v64
    %vm66 = vcmp.eq.f32.partialorder %v63, inf
    %v67 = vsel %vm66, %v63, %v65
    %vm68 = vcmp.eq.f32.partialorder %v63, 0.0
    %v69 = vand.u32 %v63, 2147483648
    %v70 = vsel %vm68, %v69, %v67
    %v71 = vsel %vm56, %v54, %v70
    %72 = vst [vmem:[#allocation8] sm:$0xf] %v71
    // Predicated region
    $region26: #{tpu_custom_call.1} parent=1 // pred_check
      _
    $region27: #{tpu_custom_call.1} parent=1 // pred_check_branch
      %74 = sbr.rel (0) target = $region29
    $region28: #{tpu_custom_call.1} parent=1 // pred_region
      %s76 = ssub.s32 64, 64
      %77 = vsyncadd [#allocation4], %s76
      %s79 = sshll.u32 [#allocation8], 4
      %s80 = int_to_ptr.vmem [resolvable:$true] %s79
      %82 = dma.vmem_to_hbm [thread:$0]  %s80, 64, %s3, [#allocation4]
    $region29: #{tpu_custom_call.1} parent=1 // pred_fallthru
      _
    // Predicated region
    $region30: #{tpu_custom_call.1} parent=1 // pred_check
      _
    $region31: #{tpu_custom_call.1} parent=1 // pred_check_branch
      %84 = sbr.rel (0) target = $region33
    $region32: #{tpu_custom_call.1} parent=1 // pred_region
      %85 = dma.done [#allocation4], 64
    $region33: #{tpu_custom_call.1} parent=1 // pred_fallthru
      _
    %86 = vsyncpa [#allocation3], 1
    %87 = vsyncpa [#allocation6], 1
    %88 = vsyncpa [#allocation4], 1

</llo_original>
